<compile_context>
chip_gen: v5e
topology: v5e:2x2
jax: 0.10.0
libtpu: 0.0.40
codegen_flags: <defaults>
</compile_context>

<pallas_src>
import jax
import jax.numpy as jnp
from jax.experimental import pallas as pl
from jax.experimental.pallas import tpu as pltpu

_LANE = 128
# Total live VMEM stays ~2 x (per-step inputs) + tiny output block; 48 MiB is
# comfortably under v7x's 64 MiB per-TC VMEM and v5e/v6e's 128 MiB physical.
_VMEM_LIMIT_BYTES = 48 * 1024 * 1024

_BUDGET_CACHE = {}


def _per_step_input_budget_bytes():
    """Generation-aware per-grid-step input byte budget.

    Bigger steps amortize the ~0.35 us fixed pipeline overhead; v5e gets a
    smaller budget (slower HBM, less to gain), v6e/v7x get larger steps.
    """
    if "b" not in _BUDGET_CACHE:
        kind = ""
        try:
            kind = jax.devices()[0].device_kind.lower()
        except Exception:
            pass
        if "v5 lite" in kind or "v5e" in kind or "v5lite" in kind:
            _BUDGET_CACHE["b"] = 3 << 20      # v5e
        else:
            _BUDGET_CACHE["b"] = 8 << 20      # v6e / v7x / newer
    return _BUDGET_CACHE["b"]


def _make_loss_sums_kernel(C, TR, SUB, RPC, HW, need_mask):
    """Per-tile reduction kernel builder (all sizes are static Python ints)."""
    FOLD = TR // SUB if SUB and TR % SUB == 0 else 1

    def fold(q):
        # (TR, 128) -> (SUB, 128) partial sums using only cheap adds.
        if SUB == TR:
            return q
        if SUB == 1:
            return jnp.sum(q, axis=0, keepdims=True)
        return q.reshape(FOLD, SUB, _LANE).sum(axis=0)

    def kernel(x_ref, t_ref, out_ref):
        # x_ref: (C, TR, 128) logits (native dtype); t_ref: (TR, 128) int targets
        # out_ref: (4, SUB, 128) f32 resident partial sums for this (chunk, batch):
        #          [ce_sum, intersection(true_pos), prob1_sum, target1_sum]
        c = pl.program_id(0)
        r = pl.program_id(2)

        @pl.when(r == 0)
        def _():
            out_ref[...] = jnp.zeros_like(out_ref)

        def accumulate(masked):
            t = t_ref[...]

            if masked:
                # Mask pixels past HW (ragged last tile, clamped duplicate
                # tiles, or zero-padded lane tail) by their flat pixel index.
                tile = c * RPC + r
                row = jax.lax.broadcasted_iota(jnp.int32, (TR, _LANE), 0)
                lane = jax.lax.broadcasted_iota(jnp.int32, (TR, _LANE), 1)
                pix = (tile * TR + row) * _LANE + lane
                valid = pix < HW
            else:
                valid = None

            if C == 2:
                # Binary specialization: everything from d = x1 - x0.
                x0 = x_ref[0].astype(jnp.float32)
                x1 = x_ref[1].astype(jnp.float32)
                d = x1 - x0
                if valid is not None:
                    # Keep transcendentals finite on unspecified boundary data.
                    d = jnp.where(valid, d, 0.0)
                e = jnp.exp(-jnp.abs(d))
                # log(1+e) with e in (0, 1] is well conditioned; log1p not
                # required here and this stays on the guaranteed lowering path.
                sp = jnp.maximum(-d, 0.0) + jnp.log(1.0 + e)   # softplus(-d) = -log p1
                rinv = 1.0 / (1.0 + e)                         # exact (feeds dice/tversky)
                p1 = jnp.where(d >= 0.0, rinv, e * rinv)       # sigmoid(d), no 2nd exp
                ce = jnp.where(t == 1, sp, sp + d)             # -log p(target class)
            else:
                # General C: stable log-softmax over the (cheap, major) class axis.
                x = x_ref[...].astype(jnp.float32)
                if valid is not None:
                    x = jnp.where(valid[None], x, 0.0)
                m = jnp.max(x, axis=0, keepdims=True)
                z = x - m
                lse = jnp.log(jnp.sum(jnp.exp(z), axis=0, keepdims=True))
                logp = z - lse                                  # (C, TR, 128)
                p1 = jnp.exp(logp[1])
                cls = jax.lax.broadcasted_iota(jnp.int32, x.shape, 0)
                ti = t.astype(jnp.int32)
                ce = -jnp.sum(jnp.where(cls == ti[None], logp, 0.0), axis=0)

            t1 = t == 1
            if valid is not None:
                vf = valid.astype(jnp.float32)
                ce = ce * vf
                p1 = p1 * vf
                t1 = jnp.logical_and(t1, valid)
            tgt1 = t1.astype(jnp.float32)

            out_ref[0] += fold(ce)          # sum of per-pixel cross entropy
            out_ref[1] += fold(p1 * tgt1)   # intersection / true positives
            out_ref[2] += fold(p1)          # sum of class-1 probabilities
            out_ref[3] += fold(tgt1)        # sum of (target == 1)

        if not need_mask:
            accumulate(False)
        else:
            # Only boundary tiles pay the per-pixel mask math; interior tiles
            # take the mask-free path.
            base = (c * RPC + r) * (TR * _LANE)
            is_full = base + TR * _LANE <= HW

            @pl.when(is_full)
            def _():
                accumulate(False)

            @pl.when(jnp.logical_not(is_full))
            def _():
                accumulate(True)

    return kernel


class CombinedLoss:
    """JAX/Pallas port of the PyTorch CombinedLoss forward pass (no learnable params)."""

    def __init__(self, alpha=0.5, gamma=2.0, num_classes=2, focal_weight=1,
                 ce_weight=0, threshold=0.3, step_size=0.02, useadaptiveloss=False,
                 tversky_alpha=0.3, tversky_beta=0.7, tv_weight=1,
                 focal_tv_weight=0, dice_weight=0, delta=2 / 3, fce=0, dice=0,
                 block_bytes=None):
        self.alpha = alpha
        self.gamma = gamma
        self.num_classes = num_classes
        self.focal_weight = focal_weight
        self.ce_weight = ce_weight
        self.threshold = threshold
        self.step_size = step_size
        self.dice_weight = dice_weight
        self.delta = delta
        self.tv_weight = tv_weight
        self.focal_tv_weight = focal_tv_weight
        self.useadaptiveloss = useadaptiveloss
        self.tversky_alpha = tversky_alpha
        self.tversky_beta = tversky_beta
        self.fce = fce
        self.dice = dice
        # Testing / tuning knob: per-step input byte budget (None = auto).
        self.block_bytes = block_bytes

    def _partial_sums(self, x, t, *, C, TR, SUB, NCH, RPC, num_r, HW, need_mask):
        N = x.shape[0]
        kernel = _make_loss_sums_kernel(C, TR, SUB, RPC, HW, need_mask)

        if NCH * RPC > num_r:
            # Extra logical tiles from the chunk split re-read the last valid
            # block; their contribution is zeroed by the in-kernel pixel mask.
            def r_block(c, r):
                return jnp.minimum(c * RPC + r, num_r - 1)
        else:
            def r_block(c, r):
                return c * RPC + r

        return pl.pallas_call(
            kernel,
            out_shape=jax.ShapeDtypeStruct((NCH, N, 4, SUB, _LANE), jnp.float32),
            grid_spec=pltpu.PrefetchScalarGridSpec(
                num_scalar_prefetch=0,
                grid=(NCH, N, RPC),
                in_specs=[
                    pl.BlockSpec((None, C, TR, _LANE),
                                 lambda c, n, r: (n, 0, r_block(c, r), 0)),
                    pl.BlockSpec((None, TR, _LANE),
                                 lambda c, n, r: (n, r_block(c, r), 0)),
                ],
                out_specs=pl.BlockSpec((None, None, 4, SUB, _LANE),
                                       lambda c, n, r: (c, n, 0, 0, 0)),
            ),
            compiler_params=pltpu.CompilerParams(
                # chunk and batch axes shard across TensorCores (v7x megacore);
                # the pixel-tile axis is the accumulation (reduction) axis.
                dimension_semantics=("parallel", "parallel", "arbitrary"),
                vmem_limit_bytes=_VMEM_LIMIT_BYTES),
        )(x, t)

    def __call__(self, inputs, targets, smooth=1e-06):
        # inputs: (N, C, H, W) logits, targets: (N, H, W) int labels (PyTorch NCHW)
        N, C, H, W = inputs.shape
        HW = H * W

        # Free reshapes only; NO dtype widening here (cast per-tile in-kernel).
        x = inputs.reshape(N, C, HW)
        t = targets.reshape(N, HW)
        if t.dtype not in (jnp.int8, jnp.uint8, jnp.int32):
            t = t.astype(jnp.int32)

        R = -(-HW // _LANE)                      # rows of 128 pixels
        HW_al = R * _LANE
        if HW_al != HW:
            # Only a lane-misaligned spatial size pays this copy; padded pixels
            # are additionally masked in-kernel by their flat pixel index.
            x = jnp.pad(x, ((0, 0), (0, 0), (0, HW_al - HW)))
            t = jnp.pad(t, ((0, 0), (0, HW_al - HW)))
        x = x.reshape(N, C, R, _LANE)
        t = t.reshape(N, R, _LANE)

        # Generation-aware per-step tile rows; multiple of 32 keeps block
        # tiling legal for f32 / bf16 / int8 inputs.
        budget = self.block_bytes or _per_step_input_budget_bytes()
        row_bytes = C * _LANE * x.dtype.itemsize + _LANE * t.dtype.itemsize
        tr_cap = max(32, (budget // row_bytes) // 32 * 32)
        if R <= tr_cap:
            TR, num_r = R, 1                     # whole image in one step
        else:
            TR = tr_cap
            num_r = -(-R // TR)                  # ragged last tile is masked, never padded
        SUB = 8 if TR % 8 == 0 else 1

        # Extra leading parallel chunk axis: gives v7x's second TensorCore work
        # even at batch==1; free on single-TC chips.
        NCH = 2 if num_r >= 2 else 1
        RPC = -(-num_r // NCH)

        need_mask = (HW_al != HW) or (num_r * TR != R) or (NCH * RPC != num_r)

        partial = self._partial_sums(x, t, C=C, TR=TR, SUB=SUB, NCH=NCH,
                                     RPC=RPC, num_r=num_r, HW=HW,
                                     need_mask=need_mask)
        sums = jnp.sum(partial, axis=(0, 1, 3, 4))   # (4,) final tiny reduction
        ce_sum, intersection, prob_sum, target_sum = (
            sums[0], sums[1], sums[2], sums[3])

        # F.cross_entropy(reduction='mean') divides by all N*H*W pixels; the
        # reference targets contain no ignore labels, so this matches exactly.
        count = jnp.float32(N * HW)
        ce_loss = ce_sum / count
        dice_loss = 1.0 - (2.0 * intersection + smooth) / (prob_sum + target_sum + smooth)
        pt = jnp.exp(-ce_loss)
        focal_loss = self.alpha * (1.0 - pt) ** self.gamma * ce_loss
        true_pos = intersection
        false_neg = target_sum - intersection     # sum((1 - p) * t)
        false_pos = prob_sum - intersection       # sum(p * (1 - t))
        tversky_loss = 1.0 - true_pos / (true_pos + self.tversky_beta * false_neg
                                         + self.tversky_alpha * false_pos + smooth)
        focal_tversky_loss = tversky_loss ** (1.0 / self.delta)

        # NOTE: the PyTorch module stores self.fce / self.dice as side effects.
        # Assigning traced values to `self` inside a jitted forward leaks
        # tracers and can silently diverge from the returned loss, so it is
        # intentionally omitted (the returned loss is unaffected).
        # TODO(synk): expose fce/dice as explicit extra outputs if callers need them.

        combined_loss = (self.dice_weight * dice_loss
                         + self.focal_weight * focal_loss
                         + self.ce_weight * ce_loss
                         + self.tv_weight * tversky_loss
                         + self.focal_tv_weight * focal_tversky_loss)
        return combined_loss


def _reference_loss(inputs, targets, smooth=1e-06, alpha=0.5, gamma=2.0,
                    tversky_alpha=0.3, tversky_beta=0.7, delta=2 / 3,
                    focal_w=1, ce_w=0, tv_w=1, ftv_w=0, dice_w=0):
    """Pure-JAX reference of the PyTorch forward, for a correctness check."""
    inputs = inputs.astype(jnp.float32)
    logp = jax.nn.log_softmax(inputs, axis=1)
    N, C, H, W = inputs.shape
    onehot = jax.nn.one_hot(targets, C, axis=1)
    ce_loss = -jnp.mean(jnp.sum(logp * onehot, axis=1))
    p1 = jax.nn.softmax(inputs, axis=1)[:, 1]
    tf = (targets == 1).astype(jnp.float32)
    inter = jnp.sum(p1 * tf)
    dice_loss = 1 - (2.0 * inter + smooth) / (jnp.sum(p1) + jnp.sum(tf) + smooth)
    pt = jnp.exp(-ce_loss)
    focal = alpha * (1 - pt) ** gamma * ce_loss
    tp = inter
    fn = jnp.sum((1 - p1) * tf)
    fp = jnp.sum(p1 * (1 - tf))
    tversky = 1 - tp / (tp + tversky_beta * fn + tversky_alpha * fp + smooth)
    ftv = tversky ** (1 / delta)
    return dice_w * dice_loss + focal_w * focal + ce_w * ce_loss + tv_w * tversky + ftv_w * ftv


if __name__ == "__main__":
    key = jax.random.PRNGKey(0)

    def run_case(n, c, h, w, block_bytes=None):
        k1, k2 = jax.random.split(jax.random.fold_in(key, n * 1000003 + h * w))
        inputs = jax.random.normal(k1, (n, c, h, w), dtype=jnp.float32)
        targets = jax.random.randint(k2, (n, h, w), 0, c, dtype=jnp.int32)
        loss_fn = CombinedLoss(block_bytes=block_bytes)
        out = jax.block_until_ready(loss_fn(inputs, targets))
        ref = _reference_loss(inputs, targets)
        assert jnp.allclose(out, ref, rtol=1e-5, atol=1e-5), (
            (n, c, h, w), float(out), float(ref))
        return out

    # Canonical small case (single full tile, no masking).
    run_case(2, 2, 16, 16)
    # Forced tiny blocks: ragged last tile + megacore chunk split (masked path).
    row_bytes_f32 = 2 * 128 * 4 + 128 * 4
    run_case(1, 2, 64, 80, block_bytes=32 * row_bytes_f32)
    # Odd tile count -> clamped duplicate tile on the second chunk.
    run_case(1, 2, 96, 128, block_bytes=32 * row_bytes_f32)
    # Lane-misaligned spatial size -> padded reshape + masked tail.
    run_case(1, 2, 20, 20)

    # TODO(synk): update_alpha_beta / useadaptiveloss epoch bookkeeping is host-side
    # state management, not part of the forward pass, and is not ported.

    print("KERNEL_OK")
</pallas_src>

<mosaic_0001>
module attributes {stable_mosaic.version = 11 : i64} {
  func.func @kernel(%arg0: i32, %arg1: i32, %arg2: i32, %arg3: memref<1x2x2x128xf32, #tpu.memory_space<vmem>>, %arg4: memref<1x2x128xi32, #tpu.memory_space<vmem>>, %arg5: memref<1x1x4x1x128xf32, #tpu.memory_space<vmem>>) attributes {dimension_semantics = [#tpu.dimension_semantics<parallel>, #tpu.dimension_semantics<parallel>, #tpu.dimension_semantics<arbitrary>], iteration_bounds = array<i64: 1, 2, 1>, scalar_prefetch = 0 : i64, scratch_operands = 0 : i64, tpu.core_type = #tpu.core_type<tc>, window_params = [{transform_indices = @transform_0, window_bounds = array<i64: 1, 2, 2, 128>}, {transform_indices = @transform_1, window_bounds = array<i64: 1, 2, 128>}, {transform_indices = @transform_2, window_bounds = array<i64: 1, 1, 4, 1, 128>}]} {
    %c0_i32 = arith.constant 0 : i32
    %0 = arith.cmpi eq, %arg2, %c0_i32 : i32
    %1 = arith.extui %0 : i1 to i32
    %c0_i32_0 = arith.constant 0 : i32
    %2 = arith.cmpi ne, %1, %c0_i32_0 : i32
    scf.if %2 {
      %cst_59 = arith.constant 0.000000e+00 : f32
      %71 = vector.broadcast %cst_59 : f32 to vector<4x1x128xf32>
      %c0_60 = arith.constant 0 : index
      %c0_61 = arith.constant 0 : index
      %c0_62 = arith.constant 0 : index
      %c0_63 = arith.constant 0 : index
      %c0_64 = arith.constant 0 : index
      %72 = vector.load %arg5[%c0_60, %c0_61, %c0_62, %c0_63, %c0_64] : memref<1x1x4x1x128xf32, #tpu.memory_space<vmem>>, vector<1x1x4x1x128xf32>
      %73 = vector.shape_cast %72 : vector<1x1x4x1x128xf32> to vector<4x1x128xf32>
      %74 = vector.shape_cast %71 : vector<4x1x128xf32> to vector<1x1x4x1x128xf32>
      tpu.vector_store %arg5[%c0_60, %c0_61, %c0_62, %c0_63, %c0_64], %74 {strides = array<i32>} : memref<1x1x4x1x128xf32, #tpu.memory_space<vmem>>, vector<1x1x4x1x128xf32>,
    } else {
    }
    %c0 = arith.constant 0 : index
    %c0_1 = arith.constant 0 : index
    %c0_2 = arith.constant 0 : index
    %3 = vector.load %arg4[%c0, %c0_1, %c0_2] : memref<1x2x128xi32, #tpu.memory_space<vmem>>, vector<1x2x128xi32>
    %4 = vector.shape_cast %3 : vector<1x2x128xi32> to vector<2x128xi32>
    %c0_3 = arith.constant 0 : index
    %c0_4 = arith.constant 0 : index
    %c0_5 = arith.constant 0 : index
    %c0_6 = arith.constant 0 : index
    %5 = vector.load %arg3[%c0_3, %c0_4, %c0_5, %c0_6] : memref<1x2x2x128xf32, #tpu.memory_space<vmem>>, vector<1x1x2x128xf32>
    %6 = vector.shape_cast %5 : vector<1x1x2x128xf32> to vector<2x128xf32>
    %c0_7 = arith.constant 0 : index
    %c1 = arith.constant 1 : index
    %c0_8 = arith.constant 0 : index
    %c0_9 = arith.constant 0 : index
    %7 = vector.load %arg3[%c0_7, %c1, %c0_8, %c0_9] : memref<1x2x2x128xf32, #tpu.memory_space<vmem>>, vector<1x1x2x128xf32>
    %8 = vector.shape_cast %7 : vector<1x1x2x128xf32> to vector<2x128xf32>
    %9 = arith.subf %8, %6 : vector<2x128xf32>
    %10 = math.absf %9 : vector<2x128xf32>
    %cst = arith.constant 0.000000e+00 : f32
    %11 = vector.broadcast %cst : f32 to vector<2x128xf32>
    %12 = arith.subf %11, %10 : vector<2x128xf32>
    %13 = math.exp %12 : vector<2x128xf32>
    %cst_10 = arith.constant 0.000000e+00 : f32
    %14 = vector.broadcast %cst_10 : f32 to vector<2x128xf32>
    %15 = arith.subf %14, %9 : vector<2x128xf32>
    %cst_11 = arith.constant 0.000000e+00 : f32
    %16 = vector.broadcast %cst_11 : f32 to vector<2x128xf32>
    %17 = arith.maximumf %15, %16 : vector<2x128xf32>
    %cst_12 = arith.constant 1.000000e+00 : f32
    %18 = vector.broadcast %cst_12 : f32 to vector<2x128xf32>
    %19 = arith.addf %18, %13 : vector<2x128xf32>
    %20 = math.log %19 : vector<2x128xf32>
    %21 = arith.addf %17, %20 : vector<2x128xf32>
    %cst_13 = arith.constant 1.000000e+00 : f32
    %22 = vector.broadcast %cst_13 : f32 to vector<2x128xf32>
    %23 = arith.addf %22, %13 : vector<2x128xf32>
    %cst_14 = arith.constant 1.000000e+00 : f32
    %24 = vector.broadcast %cst_14 : f32 to vector<2x128xf32>
    %25 = arith.divf %24, %23 : vector<2x128xf32>
    %cst_15 = arith.constant 0.000000e+00 : f32
    %26 = vector.broadcast %cst_15 : f32 to vector<2x128xf32>
    %27 = arith.cmpf oge, %9, %26 : vector<2x128xf32>
    %28 = arith.mulf %13, %25 : vector<2x128xf32>
    %29 = arith.select %27, %25, %28 : vector<2x128xi1>, vector<2x128xf32>
    %c1_i32 = arith.constant 1 : i32
    %30 = vector.broadcast %c1_i32 : i32 to vector<2x128xi32>
    %31 = arith.cmpi eq, %4, %30 : vector<2x128xi32>
    %32 = arith.addf %21, %9 : vector<2x128xf32>
    %33 = arith.select %31, %21, %32 : vector<2x128xi1>, vector<2x128xf32>
    %c1_i32_16 = arith.constant 1 : i32
    %34 = vector.broadcast %c1_i32_16 : i32 to vector<2x128xi32>
    %35 = arith.cmpi eq, %4, %34 : vector<2x128xi32>
    %36 = arith.extui %35 : vector<2x128xi1> to vector<2x128xi32>
    %37 = arith.sitofp %36 : vector<2x128xi32> to vector<2x128xf32>
    %c0_17 = arith.constant 0 : index
    %c0_18 = arith.constant 0 : index
    %c0_19 = arith.constant 0 : index
    %c0_20 = arith.constant 0 : index
    %c0_21 = arith.constant 0 : index
    %38 = vector.load %arg5[%c0_17, %c0_18, %c0_19, %c0_20, %c0_21] : memref<1x1x4x1x128xf32, #tpu.memory_space<vmem>>, vector<1x1x1x1x128xf32>
    %39 = vector.shape_cast %38 : vector<1x1x1x1x128xf32> to vector<1x128xf32>
    %cst_22 = arith.constant dense<0.000000e+00> : vector<128xf32>
    %40 = vector.multi_reduction <add>, %33, %cst_22 [0] : vector<2x128xf32> to vector<128xf32>
    %41 = vector.shape_cast %40 : vector<128xf32> to vector<1x128xf32>
    %42 = arith.addf %39, %41 : vector<1x128xf32>
    %c0_23 = arith.constant 0 : index
    %c0_24 = arith.constant 0 : index
    %c0_25 = arith.constant 0 : index
    %c0_26 = arith.constant 0 : index
    %c0_27 = arith.constant 0 : index
    %43 = vector.load %arg5[%c0_23, %c0_24, %c0_25, %c0_26, %c0_27] : memref<1x1x4x1x128xf32, #tpu.memory_space<vmem>>, vector<1x1x1x1x128xf32>
    %44 = vector.shape_cast %43 : vector<1x1x1x1x128xf32> to vector<1x128xf32>
    %45 = vector.shape_cast %42 : vector<1x128xf32> to vector<1x1x1x1x128xf32>
    tpu.vector_store %arg5[%c0_23, %c0_24, %c0_25, %c0_26, %c0_27], %45 {strides = array<i32>} : memref<1x1x4x1x128xf32, #tpu.memory_space<vmem>>, vector<1x1x1x1x128xf32>,
    %c0_28 = arith.constant 0 : index
    %c0_29 = arith.constant 0 : index
    %c1_30 = arith.constant 1 : index
    %c0_31 = arith.constant 0 : index
    %c0_32 = arith.constant 0 : index
    %46 = vector.load %arg5[%c0_28, %c0_29, %c1_30, %c0_31, %c0_32] : memref<1x1x4x1x128xf32, #tpu.memory_space<vmem>>, vector<1x1x1x1x128xf32>
    %47 = vector.shape_cast %46 : vector<1x1x1x1x128xf32> to vector<1x128xf32>
    %48 = arith.mulf %29, %37 : vector<2x128xf32>
    %cst_33 = arith.constant dense<0.000000e+00> : vector<128xf32>
    %49 = vector.multi_reduction <add>, %48, %cst_33 [0] : vector<2x128xf32> to vector<128xf32>
    %50 = vector.shape_cast %49 : vector<128xf32> to vector<1x128xf32>
    %51 = arith.addf %47, %50 : vector<1x128xf32>
    %c0_34 = arith.constant 0 : index
    %c0_35 = arith.constant 0 : index
    %c1_36 = arith.constant 1 : index
    %c0_37 = arith.constant 0 : index
    %c0_38 = arith.constant 0 : index
    %52 = vector.load %arg5[%c0_34, %c0_35, %c1_36, %c0_37, %c0_38] : memref<1x1x4x1x128xf32, #tpu.memory_space<vmem>>, vector<1x1x1x1x128xf32>
    %53 = vector.shape_cast %52 : vector<1x1x1x1x128xf32> to vector<1x128xf32>
    %54 = vector.shape_cast %51 : vector<1x128xf32> to vector<1x1x1x1x128xf32>
    tpu.vector_store %arg5[%c0_34, %c0_35, %c1_36, %c0_37, %c0_38], %54 {strides = array<i32>} : memref<1x1x4x1x128xf32, #tpu.memory_space<vmem>>, vector<1x1x1x1x128xf32>,
    %c0_39 = arith.constant 0 : index
    %c0_40 = arith.constant 0 : index
    %c2 = arith.constant 2 : index
    %c0_41 = arith.constant 0 : index
    %c0_42 = arith.constant 0 : index
    %55 = vector.load %arg5[%c0_39, %c0_40, %c2, %c0_41, %c0_42] : memref<1x1x4x1x128xf32, #tpu.memory_space<vmem>>, vector<1x1x1x1x128xf32>
    %56 = vector.shape_cast %55 : vector<1x1x1x1x128xf32> to vector<1x128xf32>
    %cst_43 = arith.constant dense<0.000000e+00> : vector<128xf32>
    %57 = vector.multi_reduction <add>, %29, %cst_43 [0] : vector<2x128xf32> to vector<128xf32>
    %58 = vector.shape_cast %57 : vector<128xf32> to vector<1x128xf32>
    %59 = arith.addf %56, %58 : vector<1x128xf32>
    %c0_44 = arith.constant 0 : index
    %c0_45 = arith.constant 0 : index
    %c2_46 = arith.constant 2 : index
    %c0_47 = arith.constant 0 : index
    %c0_48 = arith.constant 0 : index
    %60 = vector.load %arg5[%c0_44, %c0_45, %c2_46, %c0_47, %c0_48] : memref<1x1x4x1x128xf32, #tpu.memory_space<vmem>>, vector<1x1x1x1x128xf32>
    %61 = vector.shape_cast %60 : vector<1x1x1x1x128xf32> to vector<1x128xf32>
    %62 = vector.shape_cast %59 : vector<1x128xf32> to vector<1x1x1x1x128xf32>
    tpu.vector_store %arg5[%c0_44, %c0_45, %c2_46, %c0_47, %c0_48], %62 {strides = array<i32>} : memref<1x1x4x1x128xf32, #tpu.memory_space<vmem>>, vector<1x1x1x1x128xf32>,
    %c0_49 = arith.constant 0 : index
    %c0_50 = arith.constant 0 : index
    %c3 = arith.constant 3 : index
    %c0_51 = arith.constant 0 : index
    %c0_52 = arith.constant 0 : index
    %63 = vector.load %arg5[%c0_49, %c0_50, %c3, %c0_51, %c0_52] : memref<1x1x4x1x128xf32, #tpu.memory_space<vmem>>, vector<1x1x1x1x128xf32>
    %64 = vector.shape_cast %63 : vector<1x1x1x1x128xf32> to vector<1x128xf32>
    %cst_53 = arith.constant dense<0.000000e+00> : vector<128xf32>
    %65 = vector.multi_reduction <add>, %37, %cst_53 [0] : vector<2x128xf32> to vector<128xf32>
    %66 = vector.shape_cast %65 : vector<128xf32> to vector<1x128xf32>
    %67 = arith.addf %64, %66 : vector<1x128xf32>
    %c0_54 = arith.constant 0 : index
    %c0_55 = arith.constant 0 : index
    %c3_56 = arith.constant 3 : index
    %c0_57 = arith.constant 0 : index
    %c0_58 = arith.constant 0 : index
    %68 = vector.load %arg5[%c0_54, %c0_55, %c3_56, %c0_57, %c0_58] : memref<1x1x4x1x128xf32, #tpu.memory_space<vmem>>, vector<1x1x1x1x128xf32>
    %69 = vector.shape_cast %68 : vector<1x1x1x1x128xf32> to vector<1x128xf32>
    %70 = vector.shape_cast %67 : vector<1x128xf32> to vector<1x1x1x1x128xf32>
    tpu.vector_store %arg5[%c0_54, %c0_55, %c3_56, %c0_57, %c0_58], %70 {strides = array<i32>} : memref<1x1x4x1x128xf32, #tpu.memory_space<vmem>>, vector<1x1x1x1x128xf32>,
    return
  }
  func.func @transform_0(%arg0: i32, %arg1: i32, %arg2: i32) -> (i32, i32, i32, i32) {
    %c1_i32 = arith.constant 1 : i32
    %0 = arith.muli %arg0, %c1_i32 : i32
    %1 = arith.addi %0, %arg2 : i32
    %c0_i32 = arith.constant 0 : i32
    %c0_i32_0 = arith.constant 0 : i32
    %c0_i32_1 = arith.constant 0 : i32
    return %arg1, %c0_i32, %1, %c0_i32_0 : i32, i32, i32, i32
  }
  func.func @transform_1(%arg0: i32, %arg1: i32, %arg2: i32) -> (i32, i32, i32) {
    %c1_i32 = arith.constant 1 : i32
    %0 = arith.muli %arg0, %c1_i32 : i32
    %1 = arith.addi %0, %arg2 : i32
    %c0_i32 = arith.constant 0 : i32
    %c0_i32_0 = arith.constant 0 : i32
    return %arg1, %1, %c0_i32 : i32, i32, i32
  }
  func.func @transform_2(%arg0: i32, %arg1: i32, %arg2: i32) -> (i32, i32, i32, i32, i32) {
    %c0_i32 = arith.constant 0 : i32
    %c0_i32_0 = arith.constant 0 : i32
    %c0_i32_1 = arith.constant 0 : i32
    %c0_i32_2 = arith.constant 0 : i32
    return %arg0, %arg1, %c0_i32, %c0_i32_0, %c0_i32_1 : i32, i32, i32, i32, i32
  }
}

</mosaic_0001>

<llo_original>
// kernel: tpu_custom_call.1
$region0: #{tpu_custom_call.1}
  #allocation0 [shape = 'u32[]', space=smem, size = 0x4, offset = 0x4, fixed_abs, tag = 'smem constant byte address 0x4 - core index']
  #allocation1 [shape = 'u32[72,128]{1,0:T(1,128)}', space=vmem, size = 0x9000, scoped, tag = 'internal scratch']
  %s0 = inlined_call_operand.hbm [shape: f32[2,2,2,128], index: 0, kind: input, shape index: {}]
  %s1 = inlined_call_operand.hbm [shape: s32[2,2,128], index: 1, kind: input, shape index: {}]
  %s2 = inlined_call_operand.hbm [shape: f32[1,2,4,1,128], index: 2, kind: output, shape index: {}]
  %s3 = sld [smem:[#allocation0]]
  $region53: #{tpu_custom_call.1} parent=0
    _
  %s5 = ssub.s32 1, %s3
  %s6 = scalar_select 0, %s5, %s3
  $region1: #{tpu_custom_call.1} parent=0
    #allocation2 [shape = 'u8[4096]{0}', space=vmem, size = 0x1000, scoped, tag = 'input window, operand 0']
    #allocation3 [shape = 's32[2]{0}', space=sflag, size = 0x8, scoped, tag = 'scoped memory for tpu_custom_call.1']
    #allocation4 [shape = 's32[2]{0}', space=sflag, size = 0x8, scoped, tag = 'scoped memory for tpu_custom_call.1']
    #allocation5 [shape = 'u8[2048]{0}', space=vmem, size = 0x800, scoped, tag = 'input window, operand 1']
    #allocation6 [shape = 's32[2]{0}', space=sflag, size = 0x8, scoped, tag = 'scoped memory for tpu_custom_call.1']
    #allocation7 [shape = 'u8[4096]{0}', space=vmem, size = 0x1000, scoped, tag = 'output window, operand 0']
    %7 = vsyncpa [#allocation3], 0
    %s8 = scalar_lea.sflag [#allocation3], 1
    %9 = vsyncpa %s8, 0
    %10 = vsyncpa [#allocation6], 0
    %s11 = scalar_lea.sflag [#allocation6], 1
    %12 = vsyncpa %s11, 0
    %13 = vsyncpa [#allocation4], 0
    %s14 = scalar_lea.sflag [#allocation4], 1
    %15 = vsyncpa %s14, 0
    loop: start=0, step=1, limit=4
    $region2: #{tpu_custom_call.1} parent=1 // loop_pre_header
      _
    $region3: #{tpu_custom_call.1} parent=1 // loop_header
      %s17 = sphi 0, %s21
      %p18 = scmp.ge.s32.totalorder %s17, 4
      %s24 = sphi 0, %s43
      %s25 = sphi 0, %s39
      %s26 = sphi 0, %s35
      %s27 = sphi 0, %s24
      %s28 = sphi 0, %s25
      %s29 = sphi 0, %s26
      %s30 = sphi 0, %s27
      %s31 = sphi 0, %s28
      %s32 = sphi 0, %s29
      %s50 = sphi 0, %s52
      %s53 = sphi 0, %s50
      %s54 = sphi 0, %s53
      %s70 = sphi 0, %s54
      %s80 = sphi 0, %s82
      %s83 = sphi 0, %s80
      %s84 = sphi 0, %s83
      %s100 = sphi 0, %s84
      %s108 = sphi 0, %s110
      %s111 = sphi 0, %s108
      %s112 = sphi 0, %s111
      %s128 = sphi 0, %s112
    $region4: #{tpu_custom_call.1} parent=1 // loop_header_branch
      %20 = sbr.rel (%p18) target = $region8
    $region5: #{tpu_custom_call.1} parent=1 // loop_body
      %s22 = ssub.s32 %s17, 1
      %s23 = ssub.s32 %s17, 2
      %s33 = sadd.s32 1, %s26
      %p34 = scmp.ge.s32.totalorder %s33, 1
      %s35 = scalar_select %p34, 0, %s33
      %s36 = sadd.s32 1, %s25
      %s37 = scalar_select %p34, %s36, %s25
      %p38 = scmp.ge.s32.totalorder %s37, 2
      %s39 = scalar_select %p38, 0, %s37
      %s40 = sadd.s32 1, %s24
      %s41 = scalar_select %p38, %s40, %s24
      %p42 = scmp.ge.s32.totalorder %s41, 1
      %s43 = scalar_select %p42, 0, %s41
      %s44 = sadd.s32 %s24, %s26
      %s45 = sadd.s32 %s43, %s35
      %s46 = ssub.s32 %s25, %s39
      %s47 = ssub.s32 %s44, %s45
      %s48 = sor.u32 %s46, %s47
      %p49 = scmp.eq.s32.totalorder %s48, 0
      %s51 = sadd.s32 %s50, 1
      %s52 = scalar_select %p49, %s50, %s51
      %p55 = pneg %p49
      %p56 = scmp.eq.s32.totalorder %s17, 1
      %p57 = por %p55, %p56
      %p58 = scmp.ne.s32.totalorder %s50, %s53
      %p59 = scmp.eq.s32.totalorder %s17, 0
      %p60 = por %p58, %p59
      %p61 = scmp.ne.s32.totalorder %s50, %s53
      %p62 = scmp.eq.s32.totalorder %s22, 1
      %p63 = por %p61, %p62
      %p64 = scmp.ne.s32.totalorder %s53, %s54
      %p65 = scmp.eq.s32.totalorder %s22, 0
      %p66 = por %p64, %p65
      %p67 = scmp.ne.s32.totalorder %s53, %s54
      %p68 = scmp.eq.s32.totalorder %s23, 1
      %p69 = por %p67, %p68
      %p71 = scmp.ne.s32.totalorder %s54, %s70
      %p72 = scmp.eq.s32.totalorder %s23, 0
      %p73 = por %p71, %p72
      %s74 = sadd.s32 %s24, %s26
      %s75 = sadd.s32 %s43, %s35
      %s76 = ssub.s32 %s25, %s39
      %s77 = ssub.s32 %s74, %s75
      %s78 = sor.u32 %s76, %s77
      %p79 = scmp.eq.s32.totalorder %s78, 0
      %s81 = sadd.s32 %s80, 1
      %s82 = scalar_select %p79, %s80, %s81
      %p85 = pneg %p79
      %p86 = scmp.eq.s32.totalorder %s17, 1
      %p87 = por %p85, %p86
      %p88 = scmp.ne.s32.totalorder %s80, %s83
      %p89 = scmp.eq.s32.totalorder %s17, 0
      %p90 = por %p88, %p89
      %p91 = scmp.ne.s32.totalorder %s80, %s83
      %p92 = scmp.eq.s32.totalorder %s22, 1
      %p93 = por %p91, %p92
      %p94 = scmp.ne.s32.totalorder %s83, %s84
      %p95 = scmp.eq.s32.totalorder %s22, 0
      %p96 = por %p94, %p95
      %p97 = scmp.ne.s32.totalorder %s83, %s84
      %p98 = scmp.eq.s32.totalorder %s23, 1
      %p99 = por %p97, %p98
      %p101 = scmp.ne.s32.totalorder %s84, %s100
      %p102 = scmp.eq.s32.totalorder %s23, 0
      %p103 = por %p101, %p102
      %s104 = ssub.s32 %s24, %s43
      %s105 = ssub.s32 %s25, %s39
      %s106 = sor.u32 %s104, %s105
      %p107 = scmp.eq.s32.totalorder %s106, 0
      %s109 = sadd.s32 %s108, 1
      %s110 = scalar_select %p107, %s108, %s109
      %p113 = pneg %p107
      %p114 = scmp.eq.s32.totalorder %s17, 1
      %p115 = por %p113, %p114
      %p116 = scmp.ne.s32.totalorder %s108, %s111
      %p117 = scmp.eq.s32.totalorder %s17, 0
      %p118 = por %p116, %p117
      %p119 = scmp.ne.s32.totalorder %s108, %s111
      %p120 = scmp.eq.s32.totalorder %s22, 1
      %p121 = por %p119, %p120
      %p122 = scmp.ne.s32.totalorder %s111, %s112
      %p123 = scmp.eq.s32.totalorder %s22, 0
      %p124 = por %p122, %p123
      %p125 = scmp.ne.s32.totalorder %s111, %s112
      %p126 = scmp.eq.s32.totalorder %s23, 1
      %p127 = por %p125, %p126
      %p129 = scmp.ne.s32.totalorder %s112, %s128
      %p130 = scmp.eq.s32.totalorder %s23, 0
      %p131 = por %p129, %p130
      %p132 = scmp.le.s32.totalorder 1, %s17
      %p133 = scmp.lt.s32.totalorder %s17, 3
      %p134 = pnand %p132, %p133
      %p135 = pneg %p134
      // Predicated region
      $region9: #{tpu_custom_call.1} parent=5 // pred_check
        _
      $region10: #{tpu_custom_call.1} parent=5 // pred_check_branch
        %137 = sbr.rel (%p134) target = $region12
      $region11: #{tpu_custom_call.1} parent=5 // pred_region
        %s138 = ssub.s32 %s17, 1
      $region12: #{tpu_custom_call.1} parent=5 // pred_fallthru
        _
      %p139 = scmp.lt.s32.totalorder %s17, 2
      // Predicated region
      $region13: #{tpu_custom_call.1} parent=5 // pred_check
        %p140 = pneg %p139
      $region14: #{tpu_custom_call.1} parent=5 // pred_check_branch
        %142 = sbr.rel (%p140) target = $region16
      $region15: #{tpu_custom_call.1} parent=5 // pred_region
        // Predicated region
        $region17: #{tpu_custom_call.1} parent=15 // pred_check
          %p143 = pneg %p60
        $region18: #{tpu_custom_call.1} parent=15 // pred_check_branch
          %145 = sbr.rel (%p143) target = $region20
        $region19: #{tpu_custom_call.1} parent=15 // pred_region
          %s146 = sand.u32 %s50, 1
          %s147 = scalar_lea.sflag [#allocation3], %s146
          %s148 = sand.u32 %s50, 1
          %s149 = smul.addr %s148, 4
          %s150 = scalar_lea.vmem [#allocation2], %s149
          %s151 = sadd.s32 %s24, %s26
          %153 = vsyncadd %s147, 0
          %s154 = smul.addr %s25, 2
          %s155 = sadd.s32 %s151, %s154
          %s156 = smul.addr %s155, 2
          %s157 = scalar_lea.hbm %s0, %s156
          %s158 = sshll.u32 %s157, 4
          %s159 = int_to_ptr.hbm [resolvable:$true] %s158
          %s160 = sshll.u32 %s150, 4
          %s161 = int_to_ptr.vmem [resolvable:$true] %s160
          %166 = dma.hbm_to_vmem [thread:$0]  %s159, 64, %s161, %s147, 32, 32, 2
        $region20: #{tpu_custom_call.1} parent=15 // pred_fallthru
          _
        // Predicated region
        $region21: #{tpu_custom_call.1} parent=15 // pred_check
          %p167 = pneg %p90
        $region22: #{tpu_custom_call.1} parent=15 // pred_check_branch
          %169 = sbr.rel (%p167) target = $region24
        $region23: #{tpu_custom_call.1} parent=15 // pred_region
          %s170 = sand.u32 %s80, 1
          %s171 = scalar_lea.sflag [#allocation6], %s170
          %s172 = sand.u32 %s80, 1
          %s173 = smul.addr %s172, 2
          %s174 = scalar_lea.vmem [#allocation5], %s173
          %s175 = sadd.s32 %s24, %s26
          %177 = vsyncadd %s171, 0
          %s178 = sadd.s32 %s175, %s25
          %s179 = smul.addr %s178, 2
          %s180 = scalar_lea.hbm %s1, %s179
          %s182 = sshll.u32 %s180, 4
          %s183 = int_to_ptr.hbm [resolvable:$true] %s182
          %s184 = sshll.u32 %s174, 4
          %s185 = int_to_ptr.vmem [resolvable:$true] %s184
          %187 = dma.hbm_to_vmem [thread:$0]  %s183, 32, %s185, %s171
        $region24: #{tpu_custom_call.1} parent=15 // pred_fallthru
          _
      $region16: #{tpu_custom_call.1} parent=5 // pred_fallthru
        _
      %p188 = scmp.le.s32.totalorder 1, %s17
      %p189 = scmp.lt.s32.totalorder %s17, 3
      %p190 = pnand %p188, %p189
      %p191 = pneg %p190
      // Predicated region
      $region25: #{tpu_custom_call.1} parent=5 // pred_check
        _
      $region26: #{tpu_custom_call.1} parent=5 // pred_check_branch
        %193 = sbr.rel (%p190) target = $region28
      $region27: #{tpu_custom_call.1} parent=5 // pred_region
        %s194 = ssub.s32 %s17, 1
        %s195 = sand.u32 %s53, 1
        %s196 = scalar_lea.sflag [#allocation3], %s195
        %s197 = sand.u32 %s53, 1
        %s198 = smul.addr %s197, 4
        %s199 = scalar_lea.vmem [#allocation2], %s198
        // Predicated region
        $region29: #{tpu_custom_call.1} parent=27 // pred_check
          %p200 = pneg %p66
        $region30: #{tpu_custom_call.1} parent=27 // pred_check_branch
          %202 = sbr.rel (%p200) target = $region32
        $region31: #{tpu_custom_call.1} parent=27 // pred_region
          %204 = dma.done %s196, 64
        $region32: #{tpu_custom_call.1} parent=27 // pred_fallthru
          _
        %s205 = sand.u32 %s83, 1
        %s206 = scalar_lea.sflag [#allocation6], %s205
        %s207 = sand.u32 %s83, 1
        %s208 = smul.addr %s207, 2
        %s209 = scalar_lea.vmem [#allocation5], %s208
        // Predicated region
        $region33: #{tpu_custom_call.1} parent=27 // pred_check
          %p210 = pneg %p96
        $region34: #{tpu_custom_call.1} parent=27 // pred_check_branch
          %212 = sbr.rel (%p210) target = $region36
        $region35: #{tpu_custom_call.1} parent=27 // pred_region
          %214 = dma.done %s206, 32
        $region36: #{tpu_custom_call.1} parent=27 // pred_fallthru
          _
        %s215 = sand.u32 %s53, 1
        %s216 = scalar_lea.sflag [#allocation3], %s215
        %s217 = sand.u32 %s53, 1
        %s218 = smul.addr %s217, 4
        %s219 = scalar_lea.vmem [#allocation2], %s218
        %p220 = pneg %p66
        %p221 = pneg %p63
        %s222 = sand.u32 %s83, 1
        %s223 = scalar_lea.sflag [#allocation6], %s222
        %s224 = sand.u32 %s83, 1
        %s225 = smul.addr %s224, 2
        %s226 = scalar_lea.vmem [#allocation5], %s225
        %p227 = pneg %p96
        %p228 = pneg %p93
        %p229 = pneg %p124
        %p230 = pneg %p121
        %s231 = sand.u32 %s111, 1
        %s232 = scalar_lea.sflag [#allocation4], %s231
        %s233 = sand.u32 %s111, 1
        %s234 = smul.addr %s233, 4
        %s235 = scalar_lea.vmem [#allocation7], %s234
        %s236 = sadd.s32 %s27, %s29
        %s237 = sadd.s32 %s27, %s29
        %p238 = scmp.eq.s32.totalorder %s29, 0
        // Predicated region
        $region37: #{tpu_custom_call.1} parent=27 // pred_check
          %p239 = pneg %p238
        $region38: #{tpu_custom_call.1} parent=27 // pred_check_branch
          %241 = sbr.rel (%p239) target = $region40
        $region39: #{tpu_custom_call.1} parent=27 // pred_region
          %242 = vst [vmem:[%s235] sm:$0x1] 0.0
          %243 = vst [vmem:[%s235 + $0x1] sm:$0x1] 0.0
          %244 = vst [vmem:[%s235 + $0x2] sm:$0x1] 0.0
          %245 = vst [vmem:[%s235 + $0x3] sm:$0x1] 0.0
        $region40: #{tpu_custom_call.1} parent=27 // pred_fallthru
          _
        %v246 = vld [vmem:[%s209] sm:$0x3]
        %v247 = vld [vmem:[%s199] sm:$0x3]
        %s248 = scalar_lea.vmem %s199, 2 [#allocation2]
        %v249 = vld [vmem:[%s248] sm:$0x3]
        %v250 = vsub.f32 %v249, %v247
        %v251 = vand.u32 2147483647, %v250
        %v252 = vsub.f32 0.0, %v251
        %v253 = vmul.f32 %v252, 1.442695
        %v254 = vpow.pop %v253
        %v255 = vsub.f32 0.0, %v250
        %v256 = vmax.f32 %v255, 0.0
        %v257 = vadd.f32 %v254, 1.0
        %v258 = vlog2.pop %v257
        %v259 = vmul.f32 %v258, 0.6931472
        %v260 = vadd.f32 %v256, %v259
        %v261 = vrcp.pop %v257
        %v262 = vmul.f32 %v257, %v261
        %v263 = vsub.f32 1.0, %v262
        %v264 = vmul.f32 %v261, %v263
        %v265 = vadd.f32 %v261, %v264
        %vm266 = vweird.f32 %v257
        %vm267 = vweird.f32 %v261
        %vm268 = vmor %vm266, %vm267
        %v269 = vsel %vm268, %v261, %v265
        %v270 = vand.u32 2147483647, %v257
        %vm271 = vcmp.eq.f32.partialorder %v270, 8.507059e+37
        %v272 = vand.u32 %v257, 2147483648
        %v273 = vor.u32 1.1754944e-38, %v272
        %v274 = vsel %vm271, %v273, %v269
        %v275 = vmul.f32 1.0, %v274
        %vm276 = vcmp.ge.f32.partialorder %v250, 0.0
        %v277 = vmul.f32 %v254, %v275
        %v278 = vsel %vm276, %v275, %v277
        %vm279 = vcmp.eq.s32.totalorder %v246, 1
        %v280 = vadd.f32 %v260, %v250
        %v281 = vsel %vm279, %v260, %v280
        %v282 = vsel %vm279, 1, 0
        %v283 = vcvt.s32.f32 %v282
        %v284 = vld [vmem:[%s235] sm:$0x1]
        %vm285 = vcmask 1041408
        %v286 = vsel %vm285, %v281, 0.0
        %v287 = vrot.slane %v286, 4
        %v288 = vadd.f32 %v286, %v287
        %v289 = vrot.slane %v288, 2
        %v290 = vadd.f32 %v288, %v289
        %v291 = vrot.slane %v290, 1
        %v292 = vadd.f32 %v290, %v291
        %v293 = vadd.f32 %v284, %v292
        %294 = vst [vmem:[%s235] sm:$0x1] %v293
        %s295 = scalar_lea.vmem %s235, 1 [#allocation7]
        %v296 = vld [vmem:[%s295] sm:$0x1]
        %v297 = vmul.f32 %v278, %v283
        %v298 = vsel %vm285, %v297, 0.0
        %v299 = vrot.slane %v298, 4
        %v300 = vadd.f32 %v298, %v299
        %v301 = vrot.slane %v300, 2
        %v302 = vadd.f32 %v300, %v301
        %v303 = vrot.slane %v302, 1
        %v304 = vadd.f32 %v302, %v303
        %v305 = vadd.f32 %v296, %v304
        %306 = vst [vmem:[%s295] sm:$0x1] %v305
        %s307 = scalar_lea.vmem %s235, 2 [#allocation7]
        %v308 = vld [vmem:[%s307] sm:$0x1]
        %v309 = vsel %vm285, %v278, 0.0
        %v310 = vrot.slane %v309, 4
        %v311 = vadd.f32 %v309, %v310
        %v312 = vrot.slane %v311, 2
        %v313 = vadd.f32 %v311, %v312
        %v314 = vrot.slane %v313, 1
        %v315 = vadd.f32 %v313, %v314
        %v316 = vadd.f32 %v308, %v315
        %317 = vst [vmem:[%s307] sm:$0x1] %v316
        %s318 = scalar_lea.vmem %s235, 3 [#allocation7]
        %v319 = vld [vmem:[%s318] sm:$0x1]
        %v320 = vsel %vm285, %v283, 0.0
        %v321 = vrot.slane %v320, 4
        %v322 = vadd.f32 %v320, %v321
        %v323 = vrot.slane %v322, 2
        %v324 = vadd.f32 %v322, %v323
        %v325 = vrot.slane %v324, 1
        %v326 = vadd.f32 %v324, %v325
        %v327 = vadd.f32 %v319, %v326
        %328 = vst [vmem:[%s318] sm:$0x1] %v327
        %s329 = sand.u32 %s111, 1
        %s330 = scalar_lea.sflag [#allocation4], %s329
        %s331 = sand.u32 %s111, 1
        %s332 = smul.addr %s331, 4
        %s333 = scalar_lea.vmem [#allocation7], %s332
        // Predicated region
        $region41: #{tpu_custom_call.1} parent=27 // pred_check
          %p334 = pneg %p121
        $region42: #{tpu_custom_call.1} parent=27 // pred_check_branch
          %336 = sbr.rel (%p334) target = $region44
        $region43: #{tpu_custom_call.1} parent=27 // pred_region
          %338 = vsyncadd %s330, 0
          %s339 = smul.addr %s28, 4
          %s340 = smul.addr %s27, 8
          %s341 = sadd.s32 %s339, %s340
          %s342 = scalar_lea.hbm %s2, %s341
          %s343 = sshll.u32 %s333, 4
          %s344 = int_to_ptr.vmem [resolvable:$true] %s343
          %s345 = sshll.u32 %s342, 4
          %s346 = int_to_ptr.hbm [resolvable:$true] %s345
          %351 = dma.vmem_to_hbm [thread:$0]  %s344, 64, %s346, %s330, 16, 16, 1
        $region44: #{tpu_custom_call.1} parent=27 // pred_fallthru
          _
      $region28: #{tpu_custom_call.1} parent=5 // pred_fallthru
        _
      %p352 = scmp.le.s32.totalorder 2, %s17
      // Predicated region
      $region45: #{tpu_custom_call.1} parent=5 // pred_check
        %p353 = pneg %p352
      $region46: #{tpu_custom_call.1} parent=5 // pred_check_branch
        %355 = sbr.rel (%p353) target = $region48
      $region47: #{tpu_custom_call.1} parent=5 // pred_region
        %s356 = ssub.s32 %s17, 2
        // Predicated region
        $region49: #{tpu_custom_call.1} parent=47 // pred_check
          %p357 = pneg %p127
        $region50: #{tpu_custom_call.1} parent=47 // pred_check_branch
          %359 = sbr.rel (%p357) target = $region52
        $region51: #{tpu_custom_call.1} parent=47 // pred_region
          %s360 = sand.u32 %s112, 1
          %s361 = scalar_lea.sflag [#allocation4], %s360
          %s362 = sand.u32 %s112, 1
          %s363 = smul.addr %s362, 4
          %s364 = scalar_lea.vmem [#allocation7], %s363
          %366 = dma.done %s361, 64
        $region52: #{tpu_custom_call.1} parent=47 // pred_fallthru
          _
      $region48: #{tpu_custom_call.1} parent=5 // pred_fallthru
        _
    $region6: #{tpu_custom_call.1} parent=1 // loop_footer
      %s21 = sadd.s32 1, %s17
    $region7: #{tpu_custom_call.1} parent=1 // loop_footer_branch
      %16 = sbr.rel target = $region3
    $region8: #{tpu_custom_call.1} parent=1 // loop_exit
      _
    %367 = vsyncpa [#allocation3], 1
    %s368 = scalar_lea.sflag [#allocation3], 1
    %369 = vsyncpa %s368, 1
    %370 = vsyncpa [#allocation6], 1
    %s371 = scalar_lea.sflag [#allocation6], 1
    %372 = vsyncpa %s371, 1
    %373 = vsyncpa [#allocation4], 1
    %s374 = scalar_lea.sflag [#allocation4], 1
    %375 = vsyncpa %s374, 1

</llo_original>
